<compile_context>
chip_gen: v7x
topology: tpu7x:2x2x1
jax: 0.10.0
libtpu: 0.0.40
codegen_flags: <defaults>
</compile_context>

<pallas_src>
import functools

import jax
import jax.numpy as jnp
from jax.experimental import pallas as pl
from jax.experimental.pallas import tpu as pltpu


def _attention_head_kernel(x_ref, w_ref, bw_ref, v_ref, o_ref, *, s_valid):
    """One batch tile.

    x_ref : (TB, S, C) f32|bf16  hidden states (S padded to a multiple of 16)
    w_ref : (C, H)     bf16      W weight, pre-transposed + pre-cast for the MXU
    bw_ref: (1, H)     f32       W bias
    v_ref : (1, H)     f32       V weight (V bias dropped: softmax shift invariance)
    o_ref : (TB, C)    out dtype context vectors (lane-dense slab store)
    """
    TB, S, C = x_ref.shape
    H = w_ref.shape[1]
    x = x_ref[...]                                   # (TB, S, C), reused below

    # ---- Linear W: one fused MXU matmul over all TB*S rows -------------------
    # S is a multiple of 16 (wrapper pads), so this reshape is a pure relabel
    # for both f32 and bf16 layouts -- no VMEM copy of the big x tile.
    xb = x.astype(jnp.bfloat16).reshape(TB * S, C)
    att = jnp.dot(xb, w_ref[...], preferred_element_type=jnp.float32)  # (TB*S, H)
    att = jnp.tanh(att + bw_ref[...])
    att = att.reshape(TB, S, H)                       # free relabel (S % 8 == 0)

    # ---- Linear V (output width 1): VPU multiply + cross-lane reduce ---------
    # Keep the score lane-dense (TB, S) so the softmax max/exp/sum run on packed
    # vregs instead of a (TB, S, 1) layout that uses 1 of 128 lanes.
    score = jnp.sum(att * v_ref[...].reshape(1, 1, H), axis=-1)       # (TB, S) f32

    # Mask sequence padding (only emitted when the wrapper actually padded S).
    if s_valid != S:
        pos = jax.lax.broadcasted_iota(jnp.int32, (TB, S), 1)
        score = jnp.where(pos < s_valid, score, -jnp.inf)

    # ---- softmax statistics over the sequence (lane) axis --------------------
    m = jnp.max(score, axis=-1, keepdims=True)                        # (TB, 1)
    e = jnp.exp(score - m)                                            # (TB, S)
    inv_denom = pl.reciprocal(jnp.sum(e, axis=-1, keepdims=True),
                              approx=True)                            # (TB, 1)

    # ---- context = (sum_S e * x) * inv_denom ---------------------------------
    # Normalize AFTER the reduction: one (TB, C) multiply instead of a
    # (TB, S, 1)-broadcast multiply.  Accumulation stays in f32 even when x is
    # streamed as bf16.
    ctx = jnp.sum(e[:, :, None] * x.astype(jnp.float32), axis=1)      # (TB, C)
    o_ref[...] = (ctx * inv_denom).astype(o_ref.dtype)


def attention_head(hidden_states, W_w, W_b, V_w, V_b, *,
                   block_b=None, stream_bf16=False,
                   vmem_limit_bytes=48 * 1024 * 1024):
    """hidden_states: (B, S, C); W_w: (H, C); W_b: (H,); V_w: (1, H); V_b: (1,).

    stream_bf16: stream hidden_states from HBM as bf16 (halves the dominant HBM
    traffic; slight precision tradeoff in the final weighted sum).
    """
    B, S, C = hidden_states.shape
    H = W_w.shape[0]
    out_dtype = hidden_states.dtype

    # --- sequence padding: make the in-kernel reshape a free relabel ----------
    SUB = 16                                  # safe for f32 (8) and bf16 (16) tiles
    s_pad = ((S + SUB - 1) // SUB) * SUB
    x = hidden_states
    if stream_bf16:
        x = x.astype(jnp.bfloat16)
    if s_pad != S:
        x = jnp.pad(x, ((0, 0), (0, s_pad - S), (0, 0)))  # masked in the kernel

    # --- batch-tile sizing: HBM-bound kernel -> a few MiB of x per grid step --
    # Per-step footprint is ~3-4x the x tile (double-buffered x + f32 `att`/
    # temporaries), so a 4 MiB target stays well inside v7x's 64 MiB physical /
    # 32 MiB scoped VMEM while amortizing the ~0.35 us per-step overhead.
    # (v6e has 128 MiB VMEM and can push block_b / vmem_limit_bytes higher.)
    bytes_per_row = s_pad * C * x.dtype.itemsize
    TILE_TARGET_BYTES = 4 * 1024 * 1024
    if block_b is None:
        block_b = max(8, (TILE_TARGET_BYTES // max(bytes_per_row, 1)) // 8 * 8)
    # Keep >= 2 grid tiles when the batch allows: the "parallel" grid axis is
    # what shards work across v7x's 2 TensorCores (no-op on v5e/v6e).
    half_b = ((pl.cdiv(B, 2) + 7) // 8) * 8
    block_b = max(8, min(block_b, half_b))
    num_tiles = pl.cdiv(B, block_b)
    b_padded = num_tiles * block_b
    if b_padded != B:
        # Zero padding is safe: uniform softmax over constant scores times
        # all-zero rows -> zero context, sliced off below.
        x = jnp.pad(x, ((0, b_padded - B), (0, 0), (0, 0)))

    # --- operand prep (glue) ---------------------------------------------------
    w_bf = jnp.asarray(W_w).T.astype(jnp.bfloat16)             # (C, H) for the MXU
    bw = jnp.asarray(W_b).astype(jnp.float32).reshape(1, H)    # (1, H)
    v = jnp.asarray(V_w).astype(jnp.float32).reshape(1, H)     # (1, H)
    del V_b  # exactly cancelled by softmax shift invariance -> no DMA, no add

    kernel = functools.partial(_attention_head_kernel, s_valid=S)
    out = pl.pallas_call(
        kernel,
        out_shape=jax.ShapeDtypeStruct((b_padded, C), out_dtype),
        grid_spec=pltpu.PrefetchScalarGridSpec(
            num_scalar_prefetch=0,
            grid=(num_tiles,),
            in_specs=[
                pl.BlockSpec((block_b, s_pad, C), lambda i: (i, 0, 0)),
                pl.BlockSpec((C, H), lambda i: (0, 0)),
                pl.BlockSpec((1, H), lambda i: (0, 0)),
                pl.BlockSpec((1, H), lambda i: (0, 0)),
            ],
            out_specs=pl.BlockSpec((block_b, C), lambda i: (i, 0)),
        ),
        compiler_params=pltpu.CompilerParams(
            dimension_semantics=("parallel",),   # independent batch tiles
            vmem_limit_bytes=vmem_limit_bytes,   # > v5e's 16 MiB scoped default,
                                                 # < v7x's 64 MiB physical VMEM
        ),
    )(x, w_bf, bw, v)
    return out[:B] if b_padded != B else out


if __name__ == "__main__":
    # Small but TPU-friendly shapes; block_b sizing caps at ceil(B/2)=16 here,
    # giving 2 parallel grid tiles with lane-dense C=128 output stores.
    B, S, C, H = 32, 16, 128, 64

    key = jax.random.PRNGKey(0)
    kx, kw, kbw, kv, kbv = jax.random.split(key, 5)

    x = jax.random.normal(kx, (B, S, C), dtype=jnp.float32)
    W_w = jax.random.normal(kw, (H, C), dtype=jnp.float32) * 0.1
    W_b = jax.random.normal(kbw, (H,), dtype=jnp.float32) * 0.1
    V_w = jax.random.normal(kv, (1, H), dtype=jnp.float32) * 0.1
    V_b = jax.random.normal(kbv, (1,), dtype=jnp.float32) * 0.1

    # ---- f32-streamed path (default) ----------------------------------------
    out = attention_head(x, W_w, W_b, V_w, V_b)
    jax.block_until_ready(out)

    # Pure-JAX reference with the same bf16 MXU operands / f32 accumulation as
    # the kernel (same math as the PyTorch forward; V_b kept -- it cancels).
    def reference(x_in):
        att = jnp.tanh(
            jnp.einsum("bsc,hc->bsh",
                       x_in.astype(jnp.bfloat16), W_w.astype(jnp.bfloat16),
                       preferred_element_type=jnp.float32)
            + W_b
        )
        score = jnp.sum(att * V_w.reshape(1, 1, H), axis=-1, keepdims=True) + V_b
        att_w = jax.nn.softmax(score, axis=1)
        return jnp.sum(att_w * x_in.astype(jnp.float32), axis=1)

    ref = reference(x)
    assert out.shape == (B, C)
    assert jnp.allclose(out, ref, atol=5e-3, rtol=5e-3), (
        float(jnp.max(jnp.abs(out - ref))))

    # ---- bf16-streamed path (halves HBM traffic for x) ------------------------
    out_bf = attention_head(x, W_w, W_b, V_w, V_b, stream_bf16=True)
    jax.block_until_ready(out_bf)
    ref_bf = reference(x.astype(jnp.bfloat16))   # matched bf16 x in the weighted sum
    assert out_bf.shape == (B, C)
    assert jnp.allclose(out_bf, ref_bf, atol=1e-2, rtol=1e-2), (
        float(jnp.max(jnp.abs(out_bf - ref_bf))))

    print("KERNEL_OK")
</pallas_src>

<mosaic_0001>
module attributes {stable_mosaic.version = 11 : i64} {
  func.func @_attention_head_kernel(%arg0: i32, %arg1: memref<16x16x128xf32, #tpu.memory_space<vmem>>, %arg2: memref<128x64xbf16, #tpu.memory_space<vmem>>, %arg3: memref<1x64xf32, #tpu.memory_space<vmem>>, %arg4: memref<1x64xf32, #tpu.memory_space<vmem>>, %arg5: memref<16x128xf32, #tpu.memory_space<vmem>>) attributes {dimension_semantics = [#tpu.dimension_semantics<parallel>], iteration_bounds = array<i64: 2>, scalar_prefetch = 0 : i64, scratch_operands = 0 : i64, tpu.core_type = #tpu.core_type<tc>, window_params = [{transform_indices = @transform_0, window_bounds = array<i64: 16, 16, 128>}, {pipeline_mode = #tpu.pipeline_mode<synchronous>, transform_indices = @transform_1, window_bounds = array<i64: 128, 64>}, {pipeline_mode = #tpu.pipeline_mode<synchronous>, transform_indices = @transform_2, window_bounds = array<i64: 1, 64>}, {pipeline_mode = #tpu.pipeline_mode<synchronous>, transform_indices = @transform_3, window_bounds = array<i64: 1, 64>}, {transform_indices = @transform_4, window_bounds = array<i64: 16, 128>}]} {
    %c0 = arith.constant 0 : index
    %c0_0 = arith.constant 0 : index
    %c0_1 = arith.constant 0 : index
    %0 = vector.load %arg1[%c0, %c0_0, %c0_1] : memref<16x16x128xf32, #tpu.memory_space<vmem>>, vector<16x16x128xf32>
    %1 = arith.truncf %0 : vector<16x16x128xf32> to vector<16x16x128xbf16>
    %2 = vector.shape_cast %1 : vector<16x16x128xbf16> to vector<256x128xbf16>
    %c0_2 = arith.constant 0 : index
    %c0_3 = arith.constant 0 : index
    %3 = vector.load %arg2[%c0_2, %c0_3] : memref<128x64xbf16, #tpu.memory_space<vmem>>, vector<128x64xbf16>
    %cst = arith.constant dense<0.000000e+00> : vector<256x64xf32>
    %4 = tpu.matmul %2, %3, %cst {dimension_numbers = #tpu.dot_dimension_numbers<[1], [0], [0], [1], [0, 0, 1, 1], [], []>} : vector<256x128xbf16>, vector<128x64xbf16>, vector<256x64xf32> -> vector<256x64xf32>
    %c0_4 = arith.constant 0 : index
    %c0_5 = arith.constant 0 : index
    %5 = vector.load %arg3[%c0_4, %c0_5] : memref<1x64xf32, #tpu.memory_space<vmem>>, vector<1x64xf32>
    %6 = vector.broadcast %5 : vector<1x64xf32> to vector<256x64xf32>
    %7 = arith.addf %4, %6 : vector<256x64xf32>
    %8 = math.tanh %7 : vector<256x64xf32>
    %9 = vector.shape_cast %8 : vector<256x64xf32> to vector<16x16x64xf32>
    %c0_6 = arith.constant 0 : index
    %c0_7 = arith.constant 0 : index
    %10 = vector.load %arg4[%c0_6, %c0_7] : memref<1x64xf32, #tpu.memory_space<vmem>>, vector<1x64xf32>
    %11 = vector.shape_cast %10 : vector<1x64xf32> to vector<1x1x64xf32>
    %12 = vector.broadcast %11 : vector<1x1x64xf32> to vector<16x16x64xf32>
    %13 = arith.mulf %9, %12 : vector<16x16x64xf32>
    %cst_8 = arith.constant dense<0.000000e+00> : vector<16x16xf32>
    %14 = vector.multi_reduction <add>, %13, %cst_8 [2] : vector<16x16x64xf32> to vector<16x16xf32>
    %cst_9 = arith.constant dense<0xFF800000> : vector<16xf32>
    %15 = vector.multi_reduction <maximumf>, %14, %cst_9 [1] : vector<16x16xf32> to vector<16xf32>
    %16 = vector.shape_cast %15 : vector<16xf32> to vector<16x1xf32>
    %17 = vector.broadcast %16 : vector<16x1xf32> to vector<16x16xf32>
    %18 = arith.subf %14, %17 : vector<16x16xf32>
    %19 = math.exp %18 : vector<16x16xf32>
    %cst_10 = arith.constant dense<0.000000e+00> : vector<16xf32>
    %20 = vector.multi_reduction <add>, %19, %cst_10 [1] : vector<16x16xf32> to vector<16xf32>
    %21 = vector.shape_cast %20 : vector<16xf32> to vector<16x1xf32>
    %22 = tpu.reciprocal %21 {approx = true} : vector<16x1xf32> -> vector<16x1xf32>
    %23 = vector.shape_cast %19 : vector<16x16xf32> to vector<16x16x1xf32>
    %24 = vector.broadcast %23 : vector<16x16x1xf32> to vector<16x16x128xf32>
    %25 = arith.mulf %24, %0 : vector<16x16x128xf32>
    %cst_11 = arith.constant dense<0.000000e+00> : vector<16x128xf32>
    %26 = vector.multi_reduction <add>, %25, %cst_11 [1] : vector<16x16x128xf32> to vector<16x128xf32>
    %27 = vector.broadcast %22 : vector<16x1xf32> to vector<16x128xf32>
    %28 = arith.mulf %26, %27 : vector<16x128xf32>
    %c0_12 = arith.constant 0 : index
    %c0_13 = arith.constant 0 : index
    %29 = vector.load %arg5[%c0_12, %c0_13] : memref<16x128xf32, #tpu.memory_space<vmem>>, vector<16x128xf32>
    tpu.vector_store %arg5[%c0_12, %c0_13], %28 {strides = array<i32>} : memref<16x128xf32, #tpu.memory_space<vmem>>, vector<16x128xf32>,
    return
  }
  func.func @transform_0(%arg0: i32) -> (i32, i32, i32) {
    %c0_i32 = arith.constant 0 : i32
    %c0_i32_0 = arith.constant 0 : i32
    %c0_i32_1 = arith.constant 0 : i32
    return %arg0, %c0_i32, %c0_i32_0 : i32, i32, i32
  }
  func.func @transform_1(%arg0: i32) -> (i32, i32) {
    %c0_i32 = arith.constant 0 : i32
    %c0_i32_0 = arith.constant 0 : i32
    %c0_i32_1 = arith.constant 0 : i32
    return %c0_i32, %c0_i32_0 : i32, i32
  }
  func.func @transform_2(%arg0: i32) -> (i32, i32) {
    %c0_i32 = arith.constant 0 : i32
    %c0_i32_0 = arith.constant 0 : i32
    %c0_i32_1 = arith.constant 0 : i32
    return %c0_i32, %c0_i32_0 : i32, i32
  }
  func.func @transform_3(%arg0: i32) -> (i32, i32) {
    %c0_i32 = arith.constant 0 : i32
    %c0_i32_0 = arith.constant 0 : i32
    %c0_i32_1 = arith.constant 0 : i32
    return %c0_i32, %c0_i32_0 : i32, i32
  }
  func.func @transform_4(%arg0: i32) -> (i32, i32) {
    %c0_i32 = arith.constant 0 : i32
    %c0_i32_0 = arith.constant 0 : i32
    return %arg0, %c0_i32 : i32, i32
  }
}

</mosaic_0001>

<llo_original>
// kernel: tpu_custom_call.1
$region0: #{tpu_custom_call.1}
  #allocation0 [shape = 'u32[]', space=smem, size = 0x4, offset = 0x4, fixed_abs, tag = 'smem constant byte address 0x4 - core index']
  #allocation1 [shape = 'u32[144,128]{1,0:T(1,128)}', space=vmem, size = 0x12000, scoped, tag = 'internal scratch']
  %s0 = inlined_call_operand.hbm [shape: f32[32,16,128], index: 0, kind: input, shape index: {}]
  %s1 = inlined_call_operand.vmem [shape: bf16[128,64], index: 1, kind: input, shape index: {}]
  %s2 = inlined_call_operand.vmem [shape: f32[1,64], index: 2, kind: input, shape index: {}]
  %s3 = inlined_call_operand.vmem [shape: f32[1,64], index: 3, kind: input, shape index: {}]
  %s4 = inlined_call_operand.hbm [shape: f32[32,128], index: 4, kind: output, shape index: {}]
  %s5 = sld [smem:[#allocation0]]
  $region53: #{tpu_custom_call.1} parent=0
    _
  %s7 = ssub.s32 1, %s5
  %s8 = scalar_select 0, %s7, %s5
  $region1: #{tpu_custom_call.1} parent=0
    #allocation2 [shape = 'u8[262144]{0}', space=vmem, size = 0x40000, scoped, tag = 'input window, operand 0']
    #allocation3 [shape = 's32[2]{0}', space=sflag, size = 0x8, scoped, tag = 'scoped memory for tpu_custom_call.1']
    #allocation4 [shape = 's32[2]{0}', space=sflag, size = 0x8, scoped, tag = 'scoped memory for tpu_custom_call.1']
    #allocation5 [shape = 'u8[16384]{0}', space=vmem, size = 0x4000, scoped, tag = 'output window, operand 0']
    %9 = vsyncpa [#allocation3], 0
    %s10 = scalar_lea.sflag [#allocation3], 1
    %11 = vsyncpa %s10, 0
    %12 = vsyncpa [#allocation4], 0
    %s13 = scalar_lea.sflag [#allocation4], 1
    %14 = vsyncpa %s13, 0
    loop: start=0, step=1, limit=4
    $region2: #{tpu_custom_call.1} parent=1 // loop_pre_header
      _
    $region3: #{tpu_custom_call.1} parent=1 // loop_header
      %s16 = sphi 0, %s20
      %p17 = scmp.ge.s32.totalorder %s16, 4
      %s26 = sphi 0, %s28
      %s29 = sphi 0, %s26
      %s30 = sphi 0, %s29
      %s46 = sphi 0, %s30
      %s50 = sphi 0, %s50
      %s52 = sphi 0, %s50
      %s53 = sphi 0, %s52
      %s67 = sphi 0, %s53
      %s71 = sphi 0, %s71
      %s73 = sphi 0, %s71
      %s74 = sphi 0, %s73
      %s88 = sphi 0, %s74
      %s92 = sphi 0, %s92
      %s94 = sphi 0, %s92
      %s95 = sphi 0, %s94
      %s109 = sphi 0, %s95
      %s115 = sphi 0, %s117
      %s118 = sphi 0, %s115
      %s119 = sphi 0, %s118
      %s135 = sphi 0, %s119
    $region4: #{tpu_custom_call.1} parent=1 // loop_header_branch
      %19 = sbr.rel (%p17) target = $region8
    $region5: #{tpu_custom_call.1} parent=1 // loop_body
      %s21 = ssub.s32 %s16, 1
      %s22 = ssub.s32 %s16, 2
      %s23 = sadd.s32 %s16, 1
      %s24 = ssub.s32 %s16, %s23
      %p25 = scmp.eq.s32.totalorder %s24, 0
      %s27 = sadd.s32 %s26, 1
      %s28 = scalar_select %p25, %s26, %s27
      %p31 = pneg %p25
      %p32 = scmp.eq.s32.totalorder %s16, 1
      %p33 = por %p31, %p32
      %p34 = scmp.ne.s32.totalorder %s26, %s29
      %p35 = scmp.eq.s32.totalorder %s16, 0
      %p36 = por %p34, %p35
      %p37 = scmp.ne.s32.totalorder %s26, %s29
      %p38 = scmp.eq.s32.totalorder %s21, 1
      %p39 = por %p37, %p38
      %p40 = scmp.ne.s32.totalorder %s29, %s30
      %p41 = scmp.eq.s32.totalorder %s21, 0
      %p42 = por %p40, %p41
      %p43 = scmp.ne.s32.totalorder %s29, %s30
      %p44 = scmp.eq.s32.totalorder %s22, 1
      %p45 = por %p43, %p44
      %p47 = scmp.ne.s32.totalorder %s30, %s46
      %p48 = scmp.eq.s32.totalorder %s22, 0
      %p49 = por %p47, %p48
      %s51 = sadd.s32 %s50, 1
      %p54 = scmp.eq.s32.totalorder %s16, 1
      %p55 = scmp.ne.s32.totalorder %s50, %s52
      %p56 = scmp.eq.s32.totalorder %s16, 0
      %p57 = por %p55, %p56
      %p58 = scmp.ne.s32.totalorder %s50, %s52
      %p59 = scmp.eq.s32.totalorder %s21, 1
      %p60 = por %p58, %p59
      %p61 = scmp.ne.s32.totalorder %s52, %s53
      %p62 = scmp.eq.s32.totalorder %s21, 0
      %p63 = por %p61, %p62
      %p64 = scmp.ne.s32.totalorder %s52, %s53
      %p65 = scmp.eq.s32.totalorder %s22, 1
      %p66 = por %p64, %p65
      %p68 = scmp.ne.s32.totalorder %s53, %s67
      %p69 = scmp.eq.s32.totalorder %s22, 0
      %p70 = por %p68, %p69
      %s72 = sadd.s32 %s71, 1
      %p75 = scmp.eq.s32.totalorder %s16, 1
      %p76 = scmp.ne.s32.totalorder %s71, %s73
      %p77 = scmp.eq.s32.totalorder %s16, 0
      %p78 = por %p76, %p77
      %p79 = scmp.ne.s32.totalorder %s71, %s73
      %p80 = scmp.eq.s32.totalorder %s21, 1
      %p81 = por %p79, %p80
      %p82 = scmp.ne.s32.totalorder %s73, %s74
      %p83 = scmp.eq.s32.totalorder %s21, 0
      %p84 = por %p82, %p83
      %p85 = scmp.ne.s32.totalorder %s73, %s74
      %p86 = scmp.eq.s32.totalorder %s22, 1
      %p87 = por %p85, %p86
      %p89 = scmp.ne.s32.totalorder %s74, %s88
      %p90 = scmp.eq.s32.totalorder %s22, 0
      %p91 = por %p89, %p90
      %s93 = sadd.s32 %s92, 1
      %p96 = scmp.eq.s32.totalorder %s16, 1
      %p97 = scmp.ne.s32.totalorder %s92, %s94
      %p98 = scmp.eq.s32.totalorder %s16, 0
      %p99 = por %p97, %p98
      %p100 = scmp.ne.s32.totalorder %s92, %s94
      %p101 = scmp.eq.s32.totalorder %s21, 1
      %p102 = por %p100, %p101
      %p103 = scmp.ne.s32.totalorder %s94, %s95
      %p104 = scmp.eq.s32.totalorder %s21, 0
      %p105 = por %p103, %p104
      %p106 = scmp.ne.s32.totalorder %s94, %s95
      %p107 = scmp.eq.s32.totalorder %s22, 1
      %p108 = por %p106, %p107
      %p110 = scmp.ne.s32.totalorder %s95, %s109
      %p111 = scmp.eq.s32.totalorder %s22, 0
      %p112 = por %p110, %p111
      %s113 = ssub.s32 %s16, %s23
      %p114 = scmp.eq.s32.totalorder %s113, 0
      %s116 = sadd.s32 %s115, 1
      %s117 = scalar_select %p114, %s115, %s116
      %p120 = pneg %p114
      %p121 = scmp.eq.s32.totalorder %s16, 1
      %p122 = por %p120, %p121
      %p123 = scmp.ne.s32.totalorder %s115, %s118
      %p124 = scmp.eq.s32.totalorder %s16, 0
      %p125 = por %p123, %p124
      %p126 = scmp.ne.s32.totalorder %s115, %s118
      %p127 = scmp.eq.s32.totalorder %s21, 1
      %p128 = por %p126, %p127
      %p129 = scmp.ne.s32.totalorder %s118, %s119
      %p130 = scmp.eq.s32.totalorder %s21, 0
      %p131 = por %p129, %p130
      %p132 = scmp.ne.s32.totalorder %s118, %s119
      %p133 = scmp.eq.s32.totalorder %s22, 1
      %p134 = por %p132, %p133
      %p136 = scmp.ne.s32.totalorder %s119, %s135
      %p137 = scmp.eq.s32.totalorder %s22, 0
      %p138 = por %p136, %p137
      %p139 = scmp.le.s32.totalorder 1, %s16
      %p140 = scmp.lt.s32.totalorder %s16, 3
      %p141 = pnand %p139, %p140
      %p142 = pneg %p141
      // Predicated region
      $region9: #{tpu_custom_call.1} parent=5 // pred_check
        _
      $region10: #{tpu_custom_call.1} parent=5 // pred_check_branch
        %144 = sbr.rel (%p141) target = $region12
      $region11: #{tpu_custom_call.1} parent=5 // pred_region
        %s145 = ssub.s32 %s16, 1
        // Predicated region
        $region13: #{tpu_custom_call.1} parent=11 // pred_check
          %p146 = pneg %p63
        $region14: #{tpu_custom_call.1} parent=11 // pred_check_branch
          %148 = sbr.rel (%p146) target = $region16
        $region15: #{tpu_custom_call.1} parent=11 // pred_region
          _
        $region16: #{tpu_custom_call.1} parent=11 // pred_fallthru
          _
        // Predicated region
        $region17: #{tpu_custom_call.1} parent=11 // pred_check
          %p149 = pneg %p84
        $region18: #{tpu_custom_call.1} parent=11 // pred_check_branch
          %151 = sbr.rel (%p149) target = $region20
        $region19: #{tpu_custom_call.1} parent=11 // pred_region
          _
        $region20: #{tpu_custom_call.1} parent=11 // pred_fallthru
          _
        // Predicated region
        $region21: #{tpu_custom_call.1} parent=11 // pred_check
          %p152 = pneg %p105
        $region22: #{tpu_custom_call.1} parent=11 // pred_check_branch
          %154 = sbr.rel (%p152) target = $region24
        $region23: #{tpu_custom_call.1} parent=11 // pred_region
          _
        $region24: #{tpu_custom_call.1} parent=11 // pred_fallthru
          _
      $region12: #{tpu_custom_call.1} parent=5 // pred_fallthru
        _
      %p155 = scmp.lt.s32.totalorder %s16, 2
      // Predicated region
      $region25: #{tpu_custom_call.1} parent=5 // pred_check
        %p156 = pneg %p155
      $region26: #{tpu_custom_call.1} parent=5 // pred_check_branch
        %158 = sbr.rel (%p156) target = $region28
      $region27: #{tpu_custom_call.1} parent=5 // pred_region
        // Predicated region
        $region29: #{tpu_custom_call.1} parent=27 // pred_check
          %p159 = pneg %p36
        $region30: #{tpu_custom_call.1} parent=27 // pred_check_branch
          %161 = sbr.rel (%p159) target = $region32
        $region31: #{tpu_custom_call.1} parent=27 // pred_region
          %s162 = sand.u32 %s26, 1
          %s163 = scalar_lea.sflag [#allocation3], %s162
          %s164 = sand.u32 %s26, 1
          %s165 = smul.addr %s164, 256
          %s166 = scalar_lea.vmem [#allocation2], %s165
          %s167 = smul.u32 16, %s16
          %s169 = ssub.s32 4096, 4096
          %170 = vsyncadd %s163, %s169
          %s171 = smul.addr %s167, 2
          %s172 = smul.addr %s171, 128
          %s173 = scalar_lea.hbm %s0, %s172
          %s174 = sshll.u32 %s166, 4
          %s175 = int_to_ptr.vmem [resolvable:$true] %s174
          %180 = dma.hbm_to_vmem [thread:$0]  %s173, 4096, %s175, %s163, 128, 128, 8
        $region32: #{tpu_custom_call.1} parent=27 // pred_fallthru
          _
      $region28: #{tpu_custom_call.1} parent=5 // pred_fallthru
        _
      %p181 = scmp.le.s32.totalorder 1, %s16
      %p182 = scmp.lt.s32.totalorder %s16, 3
      %p183 = pnand %p181, %p182
      %p184 = pneg %p183
      // Predicated region
      $region33: #{tpu_custom_call.1} parent=5 // pred_check
        _
      $region34: #{tpu_custom_call.1} parent=5 // pred_check_branch
        %186 = sbr.rel (%p183) target = $region36
      $region35: #{tpu_custom_call.1} parent=5 // pred_region
        %s187 = ssub.s32 %s16, 1
        %s188 = sand.u32 %s29, 1
        %s189 = scalar_lea.sflag [#allocation3], %s188
        %s190 = sand.u32 %s29, 1
        %s191 = smul.addr %s190, 256
        %s192 = scalar_lea.vmem [#allocation2], %s191
        // Predicated region
        $region37: #{tpu_custom_call.1} parent=35 // pred_check
          %p193 = pneg %p42
        $region38: #{tpu_custom_call.1} parent=35 // pred_check_branch
          %195 = sbr.rel (%p193) target = $region40
        $region39: #{tpu_custom_call.1} parent=35 // pred_region
          %196 = dma.done %s189, 4096
        $region40: #{tpu_custom_call.1} parent=35 // pred_fallthru
          _
        %s197 = sand.u32 %s29, 1
        %s198 = scalar_lea.sflag [#allocation3], %s197
        %s199 = sand.u32 %s29, 1
        %s200 = smul.addr %s199, 256
        %s201 = scalar_lea.vmem [#allocation2], %s200
        %p202 = pneg %p42
        %p203 = pneg %p39
        %p204 = pneg %p63
        %p205 = pneg %p60
        %p206 = pneg %p84
        %p207 = pneg %p81
        %p208 = pneg %p105
        %p209 = pneg %p102
        %p210 = pneg %p131
        %p211 = pneg %p128
        %s212 = sand.u32 %s118, 1
        %s213 = scalar_lea.sflag [#allocation4], %s212
        %s214 = sand.u32 %s118, 1
        %s215 = smul.addr %s214, 16
        %s216 = scalar_lea.vmem [#allocation5], %s215
        %s217 = smul.u32 16, %s21
        %s218 = smul.u32 2, %s21
        %v220 = vld [vmem:[%s192] sm:$0xff]
        %v221 = vld [vmem:[%s192 + $0x8] sm:$0xff]
        %v222 = vld [vmem:[%s192 + $0x10] sm:$0xff]
        %v223 = vld [vmem:[%s192 + $0x18] sm:$0xff]
        %v224 = vld [vmem:[%s192 + $0x20] sm:$0xff]
        %v225 = vld [vmem:[%s192 + $0x28] sm:$0xff]
        %v226 = vld [vmem:[%s192 + $0x30] sm:$0xff]
        %v227 = vld [vmem:[%s192 + $0x38] sm:$0xff]
        %v228 = vld [vmem:[%s192 + $0x40] sm:$0xff]
        %v229 = vld [vmem:[%s192 + $0x48] sm:$0xff]
        %v230 = vld [vmem:[%s192 + $0x50] sm:$0xff]
        %v231 = vld [vmem:[%s192 + $0x58] sm:$0xff]
        %v232 = vld [vmem:[%s192 + $0x60] sm:$0xff]
        %v233 = vld [vmem:[%s192 + $0x68] sm:$0xff]
        %v234 = vld [vmem:[%s192 + $0x70] sm:$0xff]
        %v235 = vld [vmem:[%s192 + $0x78] sm:$0xff]
        %v236 = vld [vmem:[%s192 + $0x80] sm:$0xff]
        %v237 = vld [vmem:[%s192 + $0x88] sm:$0xff]
        %v238 = vld [vmem:[%s192 + $0x90] sm:$0xff]
        %v239 = vld [vmem:[%s192 + $0x98] sm:$0xff]
        %v240 = vld [vmem:[%s192 + $0xa0] sm:$0xff]
        %v241 = vld [vmem:[%s192 + $0xa8] sm:$0xff]
        %v242 = vld [vmem:[%s192 + $0xb0] sm:$0xff]
        %v243 = vld [vmem:[%s192 + $0xb8] sm:$0xff]
        %v244 = vld [vmem:[%s192 + $0xc0] sm:$0xff]
        %v245 = vld [vmem:[%s192 + $0xc8] sm:$0xff]
        %v246 = vld [vmem:[%s192 + $0xd0] sm:$0xff]
        %v247 = vld [vmem:[%s192 + $0xd8] sm:$0xff]
        %v248 = vld [vmem:[%s192 + $0xe0] sm:$0xff]
        %v249 = vld [vmem:[%s192 + $0xe8] sm:$0xff]
        %v250 = vld [vmem:[%s192 + $0xf0] sm:$0xff]
        %v251 = vld [vmem:[%s192 + $0xf8] sm:$0xff]
        %v252 = vpack.c.bf16 %v221, %v220
        %v253 = vpack.c.bf16 %v223, %v222
        %v254 = vpack.c.bf16 %v225, %v224
        %v255 = vpack.c.bf16 %v227, %v226
        %v256 = vpack.c.bf16 %v229, %v228
        %v257 = vpack.c.bf16 %v231, %v230
        %v258 = vpack.c.bf16 %v233, %v232
        %v259 = vpack.c.bf16 %v235, %v234
        %v260 = vpack.c.bf16 %v237, %v236
        %v261 = vpack.c.bf16 %v239, %v238
        %v262 = vpack.c.bf16 %v241, %v240
        %v263 = vpack.c.bf16 %v243, %v242
        %v264 = vpack.c.bf16 %v245, %v244
        %v265 = vpack.c.bf16 %v247, %v246
        %v266 = vpack.c.bf16 %v249, %v248
        %v267 = vpack.c.bf16 %v251, %v250
        %v268 = vld [vmem:[%s1] sm:$0xf]
        %v269 = vld [vmem:[%s1 + $0x4] sm:$0xf]
        %v270 = vld [vmem:[%s1 + $0x8] sm:$0xf]
        %v271 = vld [vmem:[%s1 + $0xc] sm:$0xf]
        %v272 = vld [vmem:[%s1 + $0x10] sm:$0xf]
        %v273 = vld [vmem:[%s1 + $0x14] sm:$0xf]
        %v274 = vld [vmem:[%s1 + $0x18] sm:$0xf]
        %v275 = vld [vmem:[%s1 + $0x1c] sm:$0xf]
        %v276 = vld [vmem:[%s1 + $0x20] sm:$0xf]
        %v277 = vld [vmem:[%s1 + $0x24] sm:$0xf]
        %v278 = vld [vmem:[%s1 + $0x28] sm:$0xf]
        %v279 = vld [vmem:[%s1 + $0x2c] sm:$0xf]
        %v280 = vld [vmem:[%s1 + $0x30] sm:$0xf]
        %v281 = vld [vmem:[%s1 + $0x34] sm:$0xf]
        %v282 = vld [vmem:[%s1 + $0x38] sm:$0xf]
        %v283 = vld [vmem:[%s1 + $0x3c] sm:$0xf]
        %v284 = vld [vmem:[%s2] sm:$0x1]
        %v286 = vlaneseq
        %v287 = vshrl.u32 %v286, 7
        %v288 = vsub.s32 0, %v287
        %v289 = vrot.slane %v284, %v288
        %v307 = vunpack.c.l.b16 %v268
        %v308 = vunpack.c.l.b16 %v269
        %v309 = vunpack.c.l.b16 %v270
        %v310 = vunpack.c.l.b16 %v271
        %v311 = vunpack.c.l.b16 %v272
        %v312 = vunpack.c.l.b16 %v273
        %v313 = vunpack.c.l.b16 %v274
        %v314 = vunpack.c.l.b16 %v275
        %v315 = vunpack.c.l.b16 %v276
        %v316 = vunpack.c.l.b16 %v277
        %v317 = vunpack.c.l.b16 %v278
        %v318 = vunpack.c.l.b16 %v279
        %v319 = vunpack.c.l.b16 %v280
        %v320 = vunpack.c.l.b16 %v281
        %v321 = vunpack.c.l.b16 %v282
        %v322 = vunpack.c.l.b16 %v283
        %v323 = vpack.c.b16 %v308, %v307
        %v324 = vpack.c.b16 %v310, %v309
        %v325 = vpack.c.b16 %v312, %v311
        %v326 = vpack.c.b16 %v314, %v313
        %v327 = vpack.c.b16 %v316, %v315
        %v328 = vpack.c.b16 %v318, %v317
        %v329 = vpack.c.b16 %v320, %v319
        %v330 = vpack.c.b16 %v322, %v321
        %339 = vmatprep.subr.bf16.mxu0 0
        %340 = vmatpush1.bf16.msra.mxu0 %v323
        %341 = vmatprep.subr.bf16.mxu0 0
        %342 = vmatpush1.bf16.msra.mxu0 %v324
        %343 = vmatprep.subr.bf16.mxu0 0
        %344 = vmatpush1.bf16.msra.mxu0 %v325
        %345 = vmatprep.subr.bf16.mxu0 0
        %346 = vmatpush1.bf16.msra.mxu0 %v326
        %347 = vmatprep.subr.bf16.mxu0 0
        %348 = vmatpush1.bf16.msra.mxu0 %v327
        %349 = vmatprep.subr.bf16.mxu0 0
        %350 = vmatpush1.bf16.msra.mxu0 %v328
        %351 = vmatprep.subr.bf16.mxu0 0
        %352 = vmatpush1.bf16.msra.mxu0 %v329
        %353 = vmatprep.subr.bf16.mxu0 0
        %354 = vmatpush1.bf16.msra.mxu0 %v330
        %355 = vmatprep.subr.bf16.mxu0 0
        %356 = vmatpush1.bf16.msra.mxu0 0
        %357 = vmatprep.subr.bf16.mxu0 0
        %358 = vmatpush1.bf16.msra.mxu0 0
        %359 = vmatprep.subr.bf16.mxu0 0
        %360 = vmatpush1.bf16.msra.mxu0 0
        %361 = vmatprep.subr.bf16.mxu0 0
        %362 = vmatpush1.bf16.msra.mxu0 0
        %363 = vmatprep.subr.bf16.mxu0 0
        %364 = vmatpush1.bf16.msra.mxu0 0
        %365 = vmatprep.subr.bf16.mxu0 0
        %366 = vmatpush1.bf16.msra.mxu0 0
        %367 = vmatprep.subr.bf16.mxu0 0
        %368 = vmatpush1.bf16.msra.mxu0 0
        %369 = vmatprep.subr.bf16.mxu0 0
        %370 = vmatpush1.bf16.msra.mxu0 0
        %371 = vmatprep.mubr.bf16.mxu0 0
        %372 = vmatmul.mubr.bf16.gmra.mrb[0].mxu0 %v252
        %v373 = vpop.f32.mrb[0].mxu0
        %v374 = vadd.f32 %v289, %v373
        %v375 = vpop.f32.mrb[0].mxu0
        %v376 = vpop.f32.mrb[0].mxu0
        %v377 = vadd.f32 %v289, %v376
        %v378 = vpop.f32.mrb[0].mxu0
        %379 = vmatprep.mubr.bf16.mxu0 0
        %380 = vmatmul.mubr.bf16.gmra.mrb[0].mxu0 %v253
        %v381 = vpop.f32.mrb[0].mxu0
        %v382 = vadd.f32 %v289, %v381
        %v383 = vpop.f32.mrb[0].mxu0
        %v384 = vpop.f32.mrb[0].mxu0
        %v385 = vadd.f32 %v289, %v384
        %v386 = vpop.f32.mrb[0].mxu0
        %387 = vmatprep.mubr.bf16.mxu0 0
        %388 = vmatmul.mubr.bf16.gmra.mrb[0].mxu0 %v254
        %v389 = vpop.f32.mrb[0].mxu0
        %v390 = vadd.f32 %v289, %v389
        %v391 = vpop.f32.mrb[0].mxu0
        %v392 = vpop.f32.mrb[0].mxu0
        %v393 = vadd.f32 %v289, %v392
        %v394 = vpop.f32.mrb[0].mxu0
        %395 = vmatprep.mubr.bf16.mxu0 0
        %396 = vmatmul.mubr.bf16.gmra.mrb[0].mxu0 %v255
        %v397 = vpop.f32.mrb[0].mxu0
        %v398 = vadd.f32 %v289, %v397
        %v399 = vpop.f32.mrb[0].mxu0
        %v400 = vpop.f32.mrb[0].mxu0
        %v401 = vadd.f32 %v289, %v400
        %v402 = vpop.f32.mrb[0].mxu0
        %403 = vmatprep.mubr.bf16.mxu0 0
        %404 = vmatmul.mubr.bf16.gmra.mrb[0].mxu0 %v256
        %v405 = vpop.f32.mrb[0].mxu0
        %v406 = vadd.f32 %v289, %v405
        %v407 = vpop.f32.mrb[0].mxu0
        %v408 = vpop.f32.mrb[0].mxu0
        %v409 = vadd.f32 %v289, %v408
        %v410 = vpop.f32.mrb[0].mxu0
        %411 = vmatprep.mubr.bf16.mxu0 0
        %412 = vmatmul.mubr.bf16.gmra.mrb[0].mxu0 %v257
        %v413 = vpop.f32.mrb[0].mxu0
        %v414 = vadd.f32 %v289, %v413
        %v415 = vpop.f32.mrb[0].mxu0
        %v416 = vpop.f32.mrb[0].mxu0
        %v417 = vadd.f32 %v289, %v416
        %v418 = vpop.f32.mrb[0].mxu0
        %419 = vmatprep.mubr.bf16.mxu0 0
        %420 = vmatmul.mubr.bf16.gmra.mrb[0].mxu0 %v258
        %v421 = vpop.f32.mrb[0].mxu0
        %v422 = vadd.f32 %v289, %v421
        %v423 = vpop.f32.mrb[0].mxu0
        %v424 = vpop.f32.mrb[0].mxu0
        %v425 = vadd.f32 %v289, %v424
        %v426 = vpop.f32.mrb[0].mxu0
        %427 = vmatprep.mubr.bf16.mxu0 0
        %428 = vmatmul.mubr.bf16.gmra.mrb[0].mxu0 %v259
        %v429 = vpop.f32.mrb[0].mxu0
        %v430 = vadd.f32 %v289, %v429
        %v431 = vpop.f32.mrb[0].mxu0
        %v432 = vpop.f32.mrb[0].mxu0
        %v433 = vadd.f32 %v289, %v432
        %v434 = vpop.f32.mrb[0].mxu0
        %435 = vmatprep.mubr.bf16.mxu0 0
        %436 = vmatmul.mubr.bf16.gmra.mrb[0].mxu0 %v260
        %v437 = vpop.f32.mrb[0].mxu0
        %v438 = vadd.f32 %v289, %v437
        %v439 = vpop.f32.mrb[0].mxu0
        %v440 = vpop.f32.mrb[0].mxu0
        %v441 = vadd.f32 %v289, %v440
        %v442 = vpop.f32.mrb[0].mxu0
        %443 = vmatprep.mubr.bf16.mxu0 0
        %444 = vmatmul.mubr.bf16.gmra.mrb[0].mxu0 %v261
        %v445 = vpop.f32.mrb[0].mxu0
        %v446 = vadd.f32 %v289, %v445
        %v447 = vpop.f32.mrb[0].mxu0
        %v448 = vpop.f32.mrb[0].mxu0
        %v449 = vadd.f32 %v289, %v448
        %v450 = vpop.f32.mrb[0].mxu0
        %451 = vmatprep.mubr.bf16.mxu0 0
        %452 = vmatmul.mubr.bf16.gmra.mrb[0].mxu0 %v262
        %v453 = vpop.f32.mrb[0].mxu0
        %v454 = vadd.f32 %v289, %v453
        %v455 = vpop.f32.mrb[0].mxu0
        %v456 = vpop.f32.mrb[0].mxu0
        %v457 = vadd.f32 %v289, %v456
        %v458 = vpop.f32.mrb[0].mxu0
        %459 = vmatprep.mubr.bf16.mxu0 0
        %460 = vmatmul.mubr.bf16.gmra.mrb[0].mxu0 %v263
        %v461 = vpop.f32.mrb[0].mxu0
        %v462 = vadd.f32 %v289, %v461
        %v463 = vpop.f32.mrb[0].mxu0
        %v464 = vpop.f32.mrb[0].mxu0
        %v465 = vadd.f32 %v289, %v464
        %v466 = vpop.f32.mrb[0].mxu0
        %467 = vmatprep.mubr.bf16.mxu0 0
        %468 = vmatmul.mubr.bf16.gmra.mrb[0].mxu0 %v264
        %v469 = vpop.f32.mrb[0].mxu0
        %v470 = vadd.f32 %v289, %v469
        %v471 = vpop.f32.mrb[0].mxu0
        %v472 = vpop.f32.mrb[0].mxu0
        %v473 = vadd.f32 %v289, %v472
        %v474 = vpop.f32.mrb[0].mxu0
        %475 = vmatprep.mubr.bf16.mxu0 0
        %476 = vmatmul.mubr.bf16.gmra.mrb[0].mxu0 %v265
        %v477 = vpop.f32.mrb[0].mxu0
        %v478 = vadd.f32 %v289, %v477
        %v479 = vpop.f32.mrb[0].mxu0
        %v480 = vpop.f32.mrb[0].mxu0
        %v481 = vadd.f32 %v289, %v480
        %v482 = vpop.f32.mrb[0].mxu0
        %483 = vmatprep.mubr.bf16.mxu0 0
        %484 = vmatmul.mubr.bf16.gmra.mrb[0].mxu0 %v266
        %v485 = vpop.f32.mrb[0].mxu0
        %v486 = vadd.f32 %v289, %v485
        %v487 = vpop.f32.mrb[0].mxu0
        %v488 = vpop.f32.mrb[0].mxu0
        %v489 = vadd.f32 %v289, %v488
        %v490 = vpop.f32.mrb[0].mxu0
        %491 = vmatprep.mubr.bf16.mxu0 0
        %492 = vmatmul.mubr.bf16.gmra.mrb[0].mxu0 %v267
        %v493 = vpop.f32.mrb[0].mxu0
        %v494 = vadd.f32 %v289, %v493
        %v495 = vpop.f32.mrb[0].mxu0
        %v496 = vpop.f32.mrb[0].mxu0
        %v497 = vadd.f32 %v289, %v496
        %v498 = vpop.f32.mrb[0].mxu0
        %499 = vdwg.mxu0
        %v500 = vtanh.pop %v374
        %v501 = vtanh.pop %v377
        %v502 = vtanh.pop %v382
        %v503 = vtanh.pop %v385
        %v504 = vtanh.pop %v390
        %v505 = vtanh.pop %v393
        %v506 = vtanh.pop %v398
        %v507 = vtanh.pop %v401
        %v508 = vtanh.pop %v406
        %v509 = vtanh.pop %v409
        %v510 = vtanh.pop %v414
        %v511 = vtanh.pop %v417
        %v512 = vtanh.pop %v422
        %v513 = vtanh.pop %v425
        %v514 = vtanh.pop %v430
        %v515 = vtanh.pop %v433
        %v516 = vtanh.pop %v438
        %v517 = vtanh.pop %v441
        %v518 = vtanh.pop %v446
        %v519 = vtanh.pop %v449
        %v520 = vtanh.pop %v454
        %v521 = vtanh.pop %v457
        %v522 = vtanh.pop %v462
        %v523 = vtanh.pop %v465
        %v524 = vtanh.pop %v470
        %v525 = vtanh.pop %v473
        %v526 = vtanh.pop %v478
        %v527 = vtanh.pop %v481
        %v528 = vtanh.pop %v486
        %v529 = vtanh.pop %v489
        %v530 = vtanh.pop %v494
        %v531 = vtanh.pop %v497
        %v532 = vld [vmem:[%s3] sm:$0x1]
        %v534 = vlaneseq
        %v535 = vshrl.u32 %v534, 7
        %v536 = vsub.s32 0, %v535
        %v537 = vrot.slane %v532, %v536
        %v539 = vmul.f32 %v500, %v537
        %v540 = vmul.f32 %v501, %v537
        %v541 = vmul.f32 %v502, %v537
        %v542 = vmul.f32 %v503, %v537
        %v543 = vmul.f32 %v504, %v537
        %v544 = vmul.f32 %v505, %v537
        %v545 = vmul.f32 %v506, %v537
        %v546 = vmul.f32 %v507, %v537
        %v547 = vmul.f32 %v508, %v537
        %v548 = vmul.f32 %v509, %v537
        %v549 = vmul.f32 %v510, %v537
        %v550 = vmul.f32 %v511, %v537
        %v551 = vmul.f32 %v512, %v537
        %v552 = vmul.f32 %v513, %v537
        %v553 = vmul.f32 %v514, %v537
        %v554 = vmul.f32 %v515, %v537
        %v555 = vmul.f32 %v516, %v537
        %v556 = vmul.f32 %v517, %v537
        %v557 = vmul.f32 %v518, %v537
        %v558 = vmul.f32 %v519, %v537
        %v559 = vmul.f32 %v520, %v537
        %v560 = vmul.f32 %v521, %v537
        %v561 = vmul.f32 %v522, %v537
        %v562 = vmul.f32 %v523, %v537
        %v563 = vmul.f32 %v524, %v537
        %v564 = vmul.f32 %v525, %v537
        %v565 = vmul.f32 %v526, %v537
        %v566 = vmul.f32 %v527, %v537
        %v567 = vmul.f32 %v528, %v537
        %v568 = vmul.f32 %v529, %v537
        %v569 = vmul.f32 %v530, %v537
        %v570 = vmul.f32 %v531, %v537
        %vm571 = vcmask 523264
        %v572 = vsel %vm571, %v539, 0.0
        %573 = vadd.xlane.f32.xlu0 %v572
        %v574 = vpop.xlane.xlu0 %573
        %v575 = vsel %vm571, %v540, 0.0
        %576 = vadd.xlane.f32.xlu0 %v575
        %v577 = vpop.xlane.xlu0 %576
        %v578 = vsel %vm571, %v541, 0.0
        %579 = vadd.xlane.f32.xlu0 %v578
        %v580 = vpop.xlane.xlu0 %579
        %v581 = vsel %vm571, %v542, 0.0
        %582 = vadd.xlane.f32.xlu0 %v581
        %v583 = vpop.xlane.xlu0 %582
        %v584 = vsel %vm571, %v543, 0.0
        %585 = vadd.xlane.f32.xlu0 %v584
        %v586 = vpop.xlane.xlu0 %585
        %v587 = vsel %vm571, %v544, 0.0
        %588 = vadd.xlane.f32.xlu0 %v587
        %v589 = vpop.xlane.xlu0 %588
        %v590 = vsel %vm571, %v545, 0.0
        %591 = vadd.xlane.f32.xlu0 %v590
        %v592 = vpop.xlane.xlu0 %591
        %v593 = vsel %vm571, %v546, 0.0
        %594 = vadd.xlane.f32.xlu0 %v593
        %v595 = vpop.xlane.xlu0 %594
        %v596 = vsel %vm571, %v547, 0.0
        %597 = vadd.xlane.f32.xlu0 %v596
        %v598 = vpop.xlane.xlu0 %597
        %v599 = vsel %vm571, %v548, 0.0
        %600 = vadd.xlane.f32.xlu0 %v599
        %v601 = vpop.xlane.xlu0 %600
        %v602 = vsel %vm571, %v549, 0.0
        %603 = vadd.xlane.f32.xlu0 %v602
        %v604 = vpop.xlane.xlu0 %603
        %v605 = vsel %vm571, %v550, 0.0
        %606 = vadd.xlane.f32.xlu0 %v605
        %v607 = vpop.xlane.xlu0 %606
        %v608 = vsel %vm571, %v551, 0.0
        %609 = vadd.xlane.f32.xlu0 %v608
        %v610 = vpop.xlane.xlu0 %609
        %v611 = vsel %vm571, %v552, 0.0
        %612 = vadd.xlane.f32.xlu0 %v611
        %v613 = vpop.xlane.xlu0 %612
        %v614 = vsel %vm571, %v553, 0.0
        %615 = vadd.xlane.f32.xlu0 %v614
        %v616 = vpop.xlane.xlu0 %615
        %v617 = vsel %vm571, %v554, 0.0
        %618 = vadd.xlane.f32.xlu0 %v617
        %v619 = vpop.xlane.xlu0 %618
        %v620 = vsel %vm571, %v555, 0.0
        %621 = vadd.xlane.f32.xlu0 %v620
        %v622 = vpop.xlane.xlu0 %621
        %v623 = vsel %vm571, %v556, 0.0
        %624 = vadd.xlane.f32.xlu0 %v623
        %v625 = vpop.xlane.xlu0 %624
        %v626 = vsel %vm571, %v557, 0.0
        %627 = vadd.xlane.f32.xlu0 %v626
        %v628 = vpop.xlane.xlu0 %627
        %v629 = vsel %vm571, %v558, 0.0
        %630 = vadd.xlane.f32.xlu0 %v629
        %v631 = vpop.xlane.xlu0 %630
        %v632 = vsel %vm571, %v559, 0.0
        %633 = vadd.xlane.f32.xlu0 %v632
        %v634 = vpop.xlane.xlu0 %633
        %v635 = vsel %vm571, %v560, 0.0
        %636 = vadd.xlane.f32.xlu0 %v635
        %v637 = vpop.xlane.xlu0 %636
        %v638 = vsel %vm571, %v561, 0.0
        %639 = vadd.xlane.f32.xlu0 %v638
        %v640 = vpop.xlane.xlu0 %639
        %v641 = vsel %vm571, %v562, 0.0
        %642 = vadd.xlane.f32.xlu0 %v641
        %v643 = vpop.xlane.xlu0 %642
        %v644 = vsel %vm571, %v563, 0.0
        %645 = vadd.xlane.f32.xlu0 %v644
        %v646 = vpop.xlane.xlu0 %645
        %v647 = vsel %vm571, %v564, 0.0
        %648 = vadd.xlane.f32.xlu0 %v647
        %v649 = vpop.xlane.xlu0 %648
        %v650 = vsel %vm571, %v565, 0.0
        %651 = vadd.xlane.f32.xlu0 %v650
        %v652 = vpop.xlane.xlu0 %651
        %v653 = vsel %vm571, %v566, 0.0
        %654 = vadd.xlane.f32.xlu0 %v653
        %v655 = vpop.xlane.xlu0 %654
        %v656 = vsel %vm571, %v567, 0.0
        %657 = vadd.xlane.f32.xlu0 %v656
        %v658 = vpop.xlane.xlu0 %657
        %v659 = vsel %vm571, %v568, 0.0
        %660 = vadd.xlane.f32.xlu0 %v659
        %v661 = vpop.xlane.xlu0 %660
        %v662 = vsel %vm571, %v569, 0.0
        %663 = vadd.xlane.f32.xlu0 %v662
        %v664 = vpop.xlane.xlu0 %663
        %v665 = vsel %vm571, %v570, 0.0
        %666 = vadd.xlane.f32.xlu0 %v665
        %v667 = vpop.xlane.xlu0 %666
        %v700 = vlaneseq
        %v701 = vand.u32 %v700, 127
        %v702 = vlaneseq
        %v703 = vshrl.u32 %v702, 7
        %v704 = vsub.s32 %v701, %v703
        %v705 = vrot.slane %v574, %v704
        %v706 = vadd.s32 %v701, 4294967288
        %v707 = vlaneseq
        %v708 = vshrl.u32 %v707, 7
        %v709 = vsub.s32 %v706, %v708
        %v710 = vrot.slane %v577, %v709
        %vm711 = vcmask 130112
        %v712 = vsel %vm711, %v710, %v705
        %v713 = vlaneseq
        %v714 = vshrl.u32 %v713, 7
        %v715 = vsub.s32 %v701, %v714
        %v716 = vrot.slane %v580, %v715
        %v717 = vlaneseq
        %v718 = vshrl.u32 %v717, 7
        %v719 = vsub.s32 %v706, %v718
        %v720 = vrot.slane %v583, %v719
        %v721 = vsel %vm711, %v720, %v716
        %v722 = vlaneseq
        %v723 = vshrl.u32 %v722, 7
        %v724 = vsub.s32 %v701, %v723
        %v725 = vrot.slane %v586, %v724
        %v726 = vlaneseq
        %v727 = vshrl.u32 %v726, 7
        %v728 = vsub.s32 %v706, %v727
        %v729 = vrot.slane %v589, %v728
        %v730 = vsel %vm711, %v729, %v725
        %v731 = vlaneseq
        %v732 = vshrl.u32 %v731, 7
        %v733 = vsub.s32 %v701, %v732
        %v734 = vrot.slane %v592, %v733
        %v735 = vlaneseq
        %v736 = vshrl.u32 %v735, 7
        %v737 = vsub.s32 %v706, %v736
        %v738 = vrot.slane %v595, %v737
        %v739 = vsel %vm711, %v738, %v734
        %v740 = vlaneseq
        %v741 = vshrl.u32 %v740, 7
        %v742 = vsub.s32 %v701, %v741
        %v743 = vrot.slane %v598, %v742
        %v744 = vlaneseq
        %v745 = vshrl.u32 %v744, 7
        %v746 = vsub.s32 %v706, %v745
        %v747 = vrot.slane %v601, %v746
        %v748 = vsel %vm711, %v747, %v743
        %v749 = vlaneseq
        %v750 = vshrl.u32 %v749, 7
        %v751 = vsub.s32 %v701, %v750
        %v752 = vrot.slane %v604, %v751
        %v753 = vlaneseq
        %v754 = vshrl.u32 %v753, 7
        %v755 = vsub.s32 %v706, %v754
        %v756 = vrot.slane %v607, %v755
        %v757 = vsel %vm711, %v756, %v752
        %v758 = vlaneseq
        %v759 = vshrl.u32 %v758, 7
        %v760 = vsub.s32 %v701, %v759
        %v761 = vrot.slane %v610, %v760
        %v762 = vlaneseq
        %v763 = vshrl.u32 %v762, 7
        %v764 = vsub.s32 %v706, %v763
        %v765 = vrot.slane %v613, %v764
        %v766 = vsel %vm711, %v765, %v761
        %v767 = vlaneseq
        %v768 = vshrl.u32 %v767, 7
        %v769 = vsub.s32 %v701, %v768
        %v770 = vrot.slane %v616, %v769
        %v771 = vlaneseq
        %v772 = vshrl.u32 %v771, 7
        %v773 = vsub.s32 %v706, %v772
        %v774 = vrot.slane %v619, %v773
        %v775 = vsel %vm711, %v774, %v770
        %v776 = vlaneseq
        %v777 = vshrl.u32 %v776, 7
        %v778 = vsub.s32 %v701, %v777
        %v779 = vrot.slane %v622, %v778
        %v780 = vlaneseq
        %v781 = vshrl.u32 %v780, 7
        %v782 = vsub.s32 %v706, %v781
        %v783 = vrot.slane %v625, %v782
        %v784 = vsel %vm711, %v783, %v779
        %v785 = vlaneseq
        %v786 = vshrl.u32 %v785, 7
        %v787 = vsub.s32 %v701, %v786
        %v788 = vrot.slane %v628, %v787
        %v789 = vlaneseq
        %v790 = vshrl.u32 %v789, 7
        %v791 = vsub.s32 %v706, %v790
        %v792 = vrot.slane %v631, %v791
        %v793 = vsel %vm711, %v792, %v788
        %v794 = vlaneseq
        %v795 = vshrl.u32 %v794, 7
        %v796 = vsub.s32 %v701, %v795
        %v797 = vrot.slane %v634, %v796
        %v798 = vlaneseq
        %v799 = vshrl.u32 %v798, 7
        %v800 = vsub.s32 %v706, %v799
        %v801 = vrot.slane %v637, %v800
        %v802 = vsel %vm711, %v801, %v797
        %v803 = vlaneseq
        %v804 = vshrl.u32 %v803, 7
        %v805 = vsub.s32 %v701, %v804
        %v806 = vrot.slane %v640, %v805
        %v807 = vlaneseq
        %v808 = vshrl.u32 %v807, 7
        %v809 = vsub.s32 %v706, %v808
        %v810 = vrot.slane %v643, %v809
        %v811 = vsel %vm711, %v810, %v806
        %v812 = vlaneseq
        %v813 = vshrl.u32 %v812, 7
        %v814 = vsub.s32 %v701, %v813
        %v815 = vrot.slane %v646, %v814
        %v816 = vlaneseq
        %v817 = vshrl.u32 %v816, 7
        %v818 = vsub.s32 %v706, %v817
        %v819 = vrot.slane %v649, %v818
        %v820 = vsel %vm711, %v819, %v815
        %v821 = vlaneseq
        %v822 = vshrl.u32 %v821, 7
        %v823 = vsub.s32 %v701, %v822
        %v824 = vrot.slane %v652, %v823
        %v825 = vlaneseq
        %v826 = vshrl.u32 %v825, 7
        %v827 = vsub.s32 %v706, %v826
        %v828 = vrot.slane %v655, %v827
        %v829 = vsel %vm711, %v828, %v824
        %v830 = vlaneseq
        %v831 = vshrl.u32 %v830, 7
        %v832 = vsub.s32 %v701, %v831
        %v833 = vrot.slane %v658, %v832
        %v834 = vlaneseq
        %v835 = vshrl.u32 %v834, 7
        %v836 = vsub.s32 %v706, %v835
        %v837 = vrot.slane %v661, %v836
        %v838 = vsel %vm711, %v837, %v833
        %v839 = vlaneseq
        %v840 = vshrl.u32 %v839, 7
        %v841 = vsub.s32 %v701, %v840
        %v842 = vrot.slane %v664, %v841
        %v843 = vlaneseq
        %v844 = vshrl.u32 %v843, 7
        %v845 = vsub.s32 %v706, %v844
        %v846 = vrot.slane %v667, %v845
        %v847 = vsel %vm711, %v846, %v842
        %vm848 = vcmask 1041409
        %v849 = vsel %vm848, %v721, %v712
        %vm850 = vcmask 1042434
        %v851 = vsel %vm850, %v730, %v849
        %vm852 = vcmask 1043459
        %v853 = vsel %vm852, %v739, %v851
        %vm854 = vcmask 1044484
        %v855 = vsel %vm854, %v748, %v853
        %vm856 = vcmask 1045509
        %v857 = vsel %vm856, %v757, %v855
        %vm858 = vcmask 1046534
        %v859 = vsel %vm858, %v766, %v857
        %vm860 = vcmask 1047559
        %v861 = vsel %vm860, %v775, %v859
        %v862 = vsel %vm848, %v793, %v784
        %v863 = vsel %vm850, %v802, %v862
        %v864 = vsel %vm852, %v811, %v863
        %v865 = vsel %vm854, %v820, %v864
        %v866 = vsel %vm856, %v829, %v865
        %v867 = vsel %vm858, %v838, %v866
        %v868 = vsel %vm860, %v847, %v867
        %vm871 = vcmask 130048
        %v872 = vsel %vm871, %v861, -inf
        %873 = vmax.xlane.f32.xlu0 %v872
        %v874 = vpop.xlane.xlu0 %873
        %v875 = vsel %vm871, %v868, -inf
        %876 = vmax.xlane.f32.xlu0 %v875
        %v877 = vpop.xlane.xlu0 %876
        %v880 = vlaneseq
        %v881 = vshrl.u32 %v880, 7
        %v882 = vsub.s32 0, %v881
        %v883 = vrot.slane %v874, %v882
        %v884 = vlaneseq
        %v885 = vshrl.u32 %v884, 7
        %v886 = vsub.s32 1, %v885
        %v887 = vrot.slane %v874, %v886
        %v888 = vlaneseq
        %v889 = vshrl.u32 %v888, 7
        %v890 = vsub.s32 2, %v889
        %v891 = vrot.slane %v874, %v890
        %v892 = vlaneseq
        %v893 = vshrl.u32 %v892, 7
        %v894 = vsub.s32 3, %v893
        %v895 = vrot.slane %v874, %v894
        %v896 = vlaneseq
        %v897 = vshrl.u32 %v896, 7
        %v898 = vsub.s32 4, %v897
        %v899 = vrot.slane %v874, %v898
        %v900 = vlaneseq
        %v901 = vshrl.u32 %v900, 7
        %v902 = vsub.s32 5, %v901
        %v903 = vrot.slane %v874, %v902
        %v904 = vlaneseq
        %v905 = vshrl.u32 %v904, 7
        %v906 = vsub.s32 6, %v905
        %v907 = vrot.slane %v874, %v906
        %v908 = vlaneseq
        %v909 = vshrl.u32 %v908, 7
        %v910 = vsub.s32 7, %v909
        %v911 = vrot.slane %v874, %v910
        %v912 = vlaneseq
        %v913 = vshrl.u32 %v912, 7
        %v914 = vsub.s32 0, %v913
        %v915 = vrot.slane %v877, %v914
        %v916 = vlaneseq
        %v917 = vshrl.u32 %v916, 7
        %v918 = vsub.s32 1, %v917
        %v919 = vrot.slane %v877, %v918
        %v920 = vlaneseq
        %v921 = vshrl.u32 %v920, 7
        %v922 = vsub.s32 2, %v921
        %v923 = vrot.slane %v877, %v922
        %v924 = vlaneseq
        %v925 = vshrl.u32 %v924, 7
        %v926 = vsub.s32 3, %v925
        %v927 = vrot.slane %v877, %v926
        %v928 = vlaneseq
        %v929 = vshrl.u32 %v928, 7
        %v930 = vsub.s32 4, %v929
        %v931 = vrot.slane %v877, %v930
        %v932 = vlaneseq
        %v933 = vshrl.u32 %v932, 7
        %v934 = vsub.s32 5, %v933
        %v935 = vrot.slane %v877, %v934
        %v936 = vlaneseq
        %v937 = vshrl.u32 %v936, 7
        %v938 = vsub.s32 6, %v937
        %v939 = vrot.slane %v877, %v938
        %v940 = vlaneseq
        %v941 = vshrl.u32 %v940, 7
        %v942 = vsub.s32 7, %v941
        %v943 = vrot.slane %v877, %v942
        %v960 = vsub.f32 %v574, %v883
        %v961 = vsub.f32 %v577, %v883
        %v962 = vsub.f32 %v580, %v887
        %v963 = vsub.f32 %v583, %v887
        %v964 = vsub.f32 %v586, %v891
        %v965 = vsub.f32 %v589, %v891
        %v966 = vsub.f32 %v592, %v895
        %v967 = vsub.f32 %v595, %v895
        %v968 = vsub.f32 %v598, %v899
        %v969 = vsub.f32 %v601, %v899
        %v970 = vsub.f32 %v604, %v903
        %v971 = vsub.f32 %v607, %v903
        %v972 = vsub.f32 %v610, %v907
        %v973 = vsub.f32 %v613, %v907
        %v974 = vsub.f32 %v616, %v911
        %v975 = vsub.f32 %v619, %v911
        %v976 = vsub.f32 %v622, %v915
        %v977 = vsub.f32 %v625, %v915
        %v978 = vsub.f32 %v628, %v919
        %v979 = vsub.f32 %v631, %v919
        %v980 = vsub.f32 %v634, %v923
        %v981 = vsub.f32 %v637, %v923
        %v982 = vsub.f32 %v640, %v927
        %v983 = vsub.f32 %v643, %v927
        %v984 = vsub.f32 %v646, %v931
        %v985 = vsub.f32 %v649, %v931
        %v986 = vsub.f32 %v652, %v935
        %v987 = vsub.f32 %v655, %v935
        %v988 = vsub.f32 %v658, %v939
        %v989 = vsub.f32 %v661, %v939
        %v990 = vsub.f32 %v664, %v943
        %v991 = vsub.f32 %v667, %v943
        %v992 = vmul.f32 %v960, 1.442695
        %v993 = vpow.pop %v992
        %v994 = vmul.f32 %v961, 1.442695
        %v995 = vpow.pop %v994
        %v996 = vmul.f32 %v962, 1.442695
        %v997 = vpow.pop %v996
        %v998 = vmul.f32 %v963, 1.442695
        %v999 = vpow.pop %v998
        %v1000 = vmul.f32 %v964, 1.442695
        %v1001 = vpow.pop %v1000
        %v1002 = vmul.f32 %v965, 1.442695
        %v1003 = vpow.pop %v1002
        %v1004 = vmul.f32 %v966, 1.442695
        %v1005 = vpow.pop %v1004
        %v1006 = vmul.f32 %v967, 1.442695
        %v1007 = vpow.pop %v1006
        %v1008 = vmul.f32 %v968, 1.442695
        %v1009 = vpow.pop %v1008
        %v1010 = vmul.f32 %v969, 1.442695
        %v1011 = vpow.pop %v1010
        %v1012 = vmul.f32 %v970, 1.442695
        %v1013 = vpow.pop %v1012
        %v1014 = vmul.f32 %v971, 1.442695
        %v1015 = vpow.pop %v1014
        %v1016 = vmul.f32 %v972, 1.442695
        %v1017 = vpow.pop %v1016
        %v1018 = vmul.f32 %v973, 1.442695
        %v1019 = vpow.pop %v1018
        %v1020 = vmul.f32 %v974, 1.442695
        %v1021 = vpow.pop %v1020
        %v1022 = vmul.f32 %v975, 1.442695
        %v1023 = vpow.pop %v1022
        %v1024 = vmul.f32 %v976, 1.442695
        %v1025 = vpow.pop %v1024
        %v1026 = vmul.f32 %v977, 1.442695
        %v1027 = vpow.pop %v1026
        %v1028 = vmul.f32 %v978, 1.442695
        %v1029 = vpow.pop %v1028
        %v1030 = vmul.f32 %v979, 1.442695
        %v1031 = vpow.pop %v1030
        %v1032 = vmul.f32 %v980, 1.442695
        %v1033 = vpow.pop %v1032
        %v1034 = vmul.f32 %v981, 1.442695
        %v1035 = vpow.pop %v1034
        %v1036 = vmul.f32 %v982, 1.442695
        %v1037 = vpow.pop %v1036
        %v1038 = vmul.f32 %v983, 1.442695
        %v1039 = vpow.pop %v1038
        %v1040 = vmul.f32 %v984, 1.442695
        %v1041 = vpow.pop %v1040
        %v1042 = vmul.f32 %v985, 1.442695
        %v1043 = vpow.pop %v1042
        %v1044 = vmul.f32 %v986, 1.442695
        %v1045 = vpow.pop %v1044
        %v1046 = vmul.f32 %v987, 1.442695
        %v1047 = vpow.pop %v1046
        %v1048 = vmul.f32 %v988, 1.442695
        %v1049 = vpow.pop %v1048
        %v1050 = vmul.f32 %v989, 1.442695
        %v1051 = vpow.pop %v1050
        %v1052 = vmul.f32 %v990, 1.442695
        %v1053 = vpow.pop %v1052
        %v1054 = vmul.f32 %v991, 1.442695
        %v1055 = vpow.pop %v1054
        %1088 = vset.pattern.permute.xlu0 0
        %1089 = vperm.xlu0 %1088, %v993
        %v1090 = vpop.permute.xlu0 %1089
        %1091 = vset.pattern.permute.xlu0 0
        %1092 = vperm.xlu0 %1091, %v995
        %v1093 = vpop.permute.xlu0 %1092
        %1094 = vset.pattern.permute.xlu0 0
        %1095 = vperm.xlu0 %1094, %v997
        %v1096 = vpop.permute.xlu0 %1095
        %1097 = vset.pattern.permute.xlu0 0
        %1098 = vperm.xlu0 %1097, %v999
        %v1099 = vpop.permute.xlu0 %1098
        %1100 = vset.pattern.permute.xlu0 0
        %1101 = vperm.xlu0 %1100, %v1001
        %v1102 = vpop.permute.xlu0 %1101
        %1103 = vset.pattern.permute.xlu0 0
        %1104 = vperm.xlu0 %1103, %v1003
        %v1105 = vpop.permute.xlu0 %1104
        %1106 = vset.pattern.permute.xlu0 0
        %1107 = vperm.xlu0 %1106, %v1005
        %v1108 = vpop.permute.xlu0 %1107
        %1109 = vset.pattern.permute.xlu0 0
        %1110 = vperm.xlu0 %1109, %v1007
        %v1111 = vpop.permute.xlu0 %1110
        %1112 = vset.pattern.permute.xlu0 0
        %1113 = vperm.xlu0 %1112, %v1009
        %v1114 = vpop.permute.xlu0 %1113
        %1115 = vset.pattern.permute.xlu0 0
        %1116 = vperm.xlu0 %1115, %v1011
        %v1117 = vpop.permute.xlu0 %1116
        %1118 = vset.pattern.permute.xlu0 0
        %1119 = vperm.xlu0 %1118, %v1013
        %v1120 = vpop.permute.xlu0 %1119
        %1121 = vset.pattern.permute.xlu0 0
        %1122 = vperm.xlu0 %1121, %v1015
        %v1123 = vpop.permute.xlu0 %1122
        %1124 = vset.pattern.permute.xlu0 0
        %1125 = vperm.xlu0 %1124, %v1017
        %v1126 = vpop.permute.xlu0 %1125
        %1127 = vset.pattern.permute.xlu0 0
        %1128 = vperm.xlu0 %1127, %v1019
        %v1129 = vpop.permute.xlu0 %1128
        %1130 = vset.pattern.permute.xlu0 0
        %1131 = vperm.xlu0 %1130, %v1021
        %v1132 = vpop.permute.xlu0 %1131
        %1133 = vset.pattern.permute.xlu0 0
        %1134 = vperm.xlu0 %1133, %v1023
        %v1135 = vpop.permute.xlu0 %1134
        %1136 = vset.pattern.permute.xlu0 0
        %1137 = vperm.xlu0 %1136, %v1025
        %v1138 = vpop.permute.xlu0 %1137
        %1139 = vset.pattern.permute.xlu0 0
        %1140 = vperm.xlu0 %1139, %v1027
        %v1141 = vpop.permute.xlu0 %1140
        %1142 = vset.pattern.permute.xlu0 0
        %1143 = vperm.xlu0 %1142, %v1029
        %v1144 = vpop.permute.xlu0 %1143
        %1145 = vset.pattern.permute.xlu0 0
        %1146 = vperm.xlu0 %1145, %v1031
        %v1147 = vpop.permute.xlu0 %1146
        %1148 = vset.pattern.permute.xlu0 0
        %1149 = vperm.xlu0 %1148, %v1033
        %v1150 = vpop.permute.xlu0 %1149
        %1151 = vset.pattern.permute.xlu0 0
        %1152 = vperm.xlu0 %1151, %v1035
        %v1153 = vpop.permute.xlu0 %1152
        %1154 = vset.pattern.permute.xlu0 0
        %1155 = vperm.xlu0 %1154, %v1037
        %v1156 = vpop.permute.xlu0 %1155
        %1157 = vset.pattern.permute.xlu0 0
        %1158 = vperm.xlu0 %1157, %v1039
        %v1159 = vpop.permute.xlu0 %1158
        %1160 = vset.pattern.permute.xlu0 0
        %1161 = vperm.xlu0 %1160, %v1041
        %v1162 = vpop.permute.xlu0 %1161
        %1163 = vset.pattern.permute.xlu0 0
        %1164 = vperm.xlu0 %1163, %v1043
        %v1165 = vpop.permute.xlu0 %1164
        %1166 = vset.pattern.permute.xlu0 0
        %1167 = vperm.xlu0 %1166, %v1045
        %v1168 = vpop.permute.xlu0 %1167
        %1169 = vset.pattern.permute.xlu0 0
        %1170 = vperm.xlu0 %1169, %v1047
        %v1171 = vpop.permute.xlu0 %1170
        %1172 = vset.pattern.permute.xlu0 0
        %1173 = vperm.xlu0 %1172, %v1049
        %v1174 = vpop.permute.xlu0 %1173
        %1175 = vset.pattern.permute.xlu0 0
        %1176 = vperm.xlu0 %1175, %v1051
        %v1177 = vpop.permute.xlu0 %1176
        %1178 = vset.pattern.permute.xlu0 0
        %1179 = vperm.xlu0 %1178, %v1053
        %v1180 = vpop.permute.xlu0 %1179
        %1181 = vset.pattern.permute.xlu0 0
        %1182 = vperm.xlu0 %1181, %v1055
        %v1183 = vpop.permute.xlu0 %1182
        %v1184 = vlaneseq
        %v1185 = vshrl.u32 %v1184, 7
        %v1186 = vsub.s32 %v701, %v1185
        %v1187 = vrot.slane %v1090, %v1186
        %v1188 = vlaneseq
        %v1189 = vshrl.u32 %v1188, 7
        %v1190 = vsub.s32 %v706, %v1189
        %v1191 = vrot.slane %v1093, %v1190
        %v1192 = vsel %vm711, %v1191, %v1187
        %v1193 = vlaneseq
        %v1194 = vshrl.u32 %v1193, 7
        %v1195 = vsub.s32 %v701, %v1194
        %v1196 = vrot.slane %v1096, %v1195
        %v1197 = vlaneseq
        %v1198 = vshrl.u32 %v1197, 7
        %v1199 = vsub.s32 %v706, %v1198
        %v1200 = vrot.slane %v1099, %v1199
        %v1201 = vsel %vm711, %v1200, %v1196
        %v1202 = vlaneseq
        %v1203 = vshrl.u32 %v1202, 7
        %v1204 = vsub.s32 %v701, %v1203
        %v1205 = vrot.slane %v1102, %v1204
        %v1206 = vlaneseq
        %v1207 = vshrl.u32 %v1206, 7
        %v1208 = vsub.s32 %v706, %v1207
        %v1209 = vrot.slane %v1105, %v1208
        %v1210 = vsel %vm711, %v1209, %v1205
        %v1211 = vlaneseq
        %v1212 = vshrl.u32 %v1211, 7
        %v1213 = vsub.s32 %v701, %v1212
        %v1214 = vrot.slane %v1108, %v1213
        %v1215 = vlaneseq
        %v1216 = vshrl.u32 %v1215, 7
        %v1217 = vsub.s32 %v706, %v1216
        %v1218 = vrot.slane %v1111, %v1217
        %v1219 = vsel %vm711, %v1218, %v1214
        %v1220 = vlaneseq
        %v1221 = vshrl.u32 %v1220, 7
        %v1222 = vsub.s32 %v701, %v1221
        %v1223 = vrot.slane %v1114, %v1222
        %v1224 = vlaneseq
        %v1225 = vshrl.u32 %v1224, 7
        %v1226 = vsub.s32 %v706, %v1225
        %v1227 = vrot.slane %v1117, %v1226
        %v1228 = vsel %vm711, %v1227, %v1223
        %v1229 = vlaneseq
        %v1230 = vshrl.u32 %v1229, 7
        %v1231 = vsub.s32 %v701, %v1230
        %v1232 = vrot.slane %v1120, %v1231
        %v1233 = vlaneseq
        %v1234 = vshrl.u32 %v1233, 7
        %v1235 = vsub.s32 %v706, %v1234
        %v1236 = vrot.slane %v1123, %v1235
        %v1237 = vsel %vm711, %v1236, %v1232
        %v1238 = vlaneseq
        %v1239 = vshrl.u32 %v1238, 7
        %v1240 = vsub.s32 %v701, %v1239
        %v1241 = vrot.slane %v1126, %v1240
        %v1242 = vlaneseq
        %v1243 = vshrl.u32 %v1242, 7
        %v1244 = vsub.s32 %v706, %v1243
        %v1245 = vrot.slane %v1129, %v1244
        %v1246 = vsel %vm711, %v1245, %v1241
        %v1247 = vlaneseq
        %v1248 = vshrl.u32 %v1247, 7
        %v1249 = vsub.s32 %v701, %v1248
        %v1250 = vrot.slane %v1132, %v1249
        %v1251 = vlaneseq
        %v1252 = vshrl.u32 %v1251, 7
        %v1253 = vsub.s32 %v706, %v1252
        %v1254 = vrot.slane %v1135, %v1253
        %v1255 = vsel %vm711, %v1254, %v1250
        %v1256 = vlaneseq
        %v1257 = vshrl.u32 %v1256, 7
        %v1258 = vsub.s32 %v701, %v1257
        %v1259 = vrot.slane %v1138, %v1258
        %v1260 = vlaneseq
        %v1261 = vshrl.u32 %v1260, 7
        %v1262 = vsub.s32 %v706, %v1261
        %v1263 = vrot.slane %v1141, %v1262
        %v1264 = vsel %vm711, %v1263, %v1259
        %v1265 = vlaneseq
        %v1266 = vshrl.u32 %v1265, 7
        %v1267 = vsub.s32 %v701, %v1266
        %v1268 = vrot.slane %v1144, %v1267
        %v1269 = vlaneseq
        %v1270 = vshrl.u32 %v1269, 7
        %v1271 = vsub.s32 %v706, %v1270
        %v1272 = vrot.slane %v1147, %v1271
        %v1273 = vsel %vm711, %v1272, %v1268
        %v1274 = vlaneseq
        %v1275 = vshrl.u32 %v1274, 7
        %v1276 = vsub.s32 %v701, %v1275
        %v1277 = vrot.slane %v1150, %v1276
        %v1278 = vlaneseq
        %v1279 = vshrl.u32 %v1278, 7
        %v1280 = vsub.s32 %v706, %v1279
        %v1281 = vrot.slane %v1153, %v1280
        %v1282 = vsel %vm711, %v1281, %v1277
        %v1283 = vlaneseq
        %v1284 = vshrl.u32 %v1283, 7
        %v1285 = vsub.s32 %v701, %v1284
        %v1286 = vrot.slane %v1156, %v1285
        %v1287 = vlaneseq
        %v1288 = vshrl.u32 %v1287, 7
        %v1289 = vsub.s32 %v706, %v1288
        %v1290 = vrot.slane %v1159, %v1289
        %v1291 = vsel %vm711, %v1290, %v1286
        %v1292 = vlaneseq
        %v1293 = vshrl.u32 %v1292, 7
        %v1294 = vsub.s32 %v701, %v1293
        %v1295 = vrot.slane %v1162, %v1294
        %v1296 = vlaneseq
        %v1297 = vshrl.u32 %v1296, 7
        %v1298 = vsub.s32 %v706, %v1297
        %v1299 = vrot.slane %v1165, %v1298
        %v1300 = vsel %vm711, %v1299, %v1295
        %v1301 = vlaneseq
        %v1302 = vshrl.u32 %v1301, 7
        %v1303 = vsub.s32 %v701, %v1302
        %v1304 = vrot.slane %v1168, %v1303
        %v1305 = vlaneseq
        %v1306 = vshrl.u32 %v1305, 7
        %v1307 = vsub.s32 %v706, %v1306
        %v1308 = vrot.slane %v1171, %v1307
        %v1309 = vsel %vm711, %v1308, %v1304
        %v1310 = vlaneseq
        %v1311 = vshrl.u32 %v1310, 7
        %v1312 = vsub.s32 %v701, %v1311
        %v1313 = vrot.slane %v1174, %v1312
        %v1314 = vlaneseq
        %v1315 = vshrl.u32 %v1314, 7
        %v1316 = vsub.s32 %v706, %v1315
        %v1317 = vrot.slane %v1177, %v1316
        %v1318 = vsel %vm711, %v1317, %v1313
        %v1319 = vlaneseq
        %v1320 = vshrl.u32 %v1319, 7
        %v1321 = vsub.s32 %v701, %v1320
        %v1322 = vrot.slane %v1180, %v1321
        %v1323 = vlaneseq
        %v1324 = vshrl.u32 %v1323, 7
        %v1325 = vsub.s32 %v706, %v1324
        %v1326 = vrot.slane %v1183, %v1325
        %v1327 = vsel %vm711, %v1326, %v1322
        %v1328 = vsel %vm848, %v1201, %v1192
        %v1329 = vsel %vm850, %v1210, %v1328
        %v1330 = vsel %vm852, %v1219, %v1329
        %v1331 = vsel %vm854, %v1228, %v1330
        %v1332 = vsel %vm856, %v1237, %v1331
        %v1333 = vsel %vm858, %v1246, %v1332
        %v1334 = vsel %vm860, %v1255, %v1333
        %v1335 = vsel %vm848, %v1273, %v1264
        %v1336 = vsel %vm850, %v1282, %v1335
        %v1337 = vsel %vm852, %v1291, %v1336
        %v1338 = vsel %vm854, %v1300, %v1337
        %v1339 = vsel %vm856, %v1309, %v1338
        %v1340 = vsel %vm858, %v1318, %v1339
        %v1341 = vsel %vm860, %v1327, %v1340
        %v1344 = vsel %vm871, %v1334, 0.0
        %1345 = vadd.xlane.f32.xlu0 %v1344
        %v1346 = vpop.xlane.xlu0 %1345
        %v1347 = vsel %vm871, %v1341, 0.0
        %1348 = vadd.xlane.f32.xlu0 %v1347
        %v1349 = vpop.xlane.xlu0 %1348
        %v1350 = vrcp.pop %v1346
        %v1351 = vrcp.pop %v1349
        %v1384 = vmul.f32 %v1090, %v220
        %v1385 = vmul.f32 %v1093, %v221
        %v1386 = vmul.f32 %v1096, %v222
        %v1387 = vmul.f32 %v1099, %v223
        %v1388 = vmul.f32 %v1102, %v224
        %v1389 = vmul.f32 %v1105, %v225
        %v1390 = vmul.f32 %v1108, %v226
        %v1391 = vmul.f32 %v1111, %v227
        %v1392 = vmul.f32 %v1114, %v228
        %v1393 = vmul.f32 %v1117, %v229
        %v1394 = vmul.f32 %v1120, %v230
        %v1395 = vmul.f32 %v1123, %v231
        %v1396 = vmul.f32 %v1126, %v232
        %v1397 = vmul.f32 %v1129, %v233
        %v1398 = vmul.f32 %v1132, %v234
        %v1399 = vmul.f32 %v1135, %v235
        %v1400 = vmul.f32 %v1138, %v236
        %v1401 = vmul.f32 %v1141, %v237
        %v1402 = vmul.f32 %v1144, %v238
        %v1403 = vmul.f32 %v1147, %v239
        %v1404 = vmul.f32 %v1150, %v240
        %v1405 = vmul.f32 %v1153, %v241
        %v1406 = vmul.f32 %v1156, %v242
        %v1407 = vmul.f32 %v1159, %v243
        %v1408 = vmul.f32 %v1162, %v244
        %v1409 = vmul.f32 %v1165, %v245
        %v1410 = vmul.f32 %v1168, %v246
        %v1411 = vmul.f32 %v1171, %v247
        %v1412 = vmul.f32 %v1174, %v248
        %v1413 = vmul.f32 %v1177, %v249
        %v1414 = vmul.f32 %v1180, %v250
        %v1415 = vmul.f32 %v1183, %v251
        %v1416 = vadd.f32 %v1384, %v1385
        %v1417 = vrot.slane %v1416, 4
        %v1418 = vadd.f32 %v1416, %v1417
        %v1419 = vrot.slane %v1418, 2
        %v1420 = vadd.f32 %v1418, %v1419
        %v1421 = vrot.slane %v1420, 1
        %v1422 = vadd.f32 %v1420, %v1421
        %v1423 = vadd.f32 %v1386, %v1387
        %v1424 = vrot.slane %v1423, 4
        %v1425 = vadd.f32 %v1423, %v1424
        %v1426 = vrot.slane %v1425, 2
        %v1427 = vadd.f32 %v1425, %v1426
        %v1428 = vrot.slane %v1427, 1
        %v1429 = vadd.f32 %v1427, %v1428
        %v1430 = vadd.f32 %v1388, %v1389
        %v1431 = vrot.slane %v1430, 4
        %v1432 = vadd.f32 %v1430, %v1431
        %v1433 = vrot.slane %v1432, 2
        %v1434 = vadd.f32 %v1432, %v1433
        %v1435 = vrot.slane %v1434, 1
        %v1436 = vadd.f32 %v1434, %v1435
        %v1437 = vadd.f32 %v1390, %v1391
        %v1438 = vrot.slane %v1437, 4
        %v1439 = vadd.f32 %v1437, %v1438
        %v1440 = vrot.slane %v1439, 2
        %v1441 = vadd.f32 %v1439, %v1440
        %v1442 = vrot.slane %v1441, 1
        %v1443 = vadd.f32 %v1441, %v1442
        %v1444 = vadd.f32 %v1392, %v1393
        %v1445 = vrot.slane %v1444, 4
        %v1446 = vadd.f32 %v1444, %v1445
        %v1447 = vrot.slane %v1446, 2
        %v1448 = vadd.f32 %v1446, %v1447
        %v1449 = vrot.slane %v1448, 1
        %v1450 = vadd.f32 %v1448, %v1449
        %v1451 = vadd.f32 %v1394, %v1395
        %v1452 = vrot.slane %v1451, 4
        %v1453 = vadd.f32 %v1451, %v1452
        %v1454 = vrot.slane %v1453, 2
        %v1455 = vadd.f32 %v1453, %v1454
        %v1456 = vrot.slane %v1455, 1
        %v1457 = vadd.f32 %v1455, %v1456
        %v1458 = vadd.f32 %v1396, %v1397
        %v1459 = vrot.slane %v1458, 4
        %v1460 = vadd.f32 %v1458, %v1459
        %v1461 = vrot.slane %v1460, 2
        %v1462 = vadd.f32 %v1460, %v1461
        %v1463 = vrot.slane %v1462, 1
        %v1464 = vadd.f32 %v1462, %v1463
        %v1465 = vadd.f32 %v1398, %v1399
        %v1466 = vrot.slane %v1465, 4
        %v1467 = vadd.f32 %v1465, %v1466
        %v1468 = vrot.slane %v1467, 2
        %v1469 = vadd.f32 %v1467, %v1468
        %v1470 = vrot.slane %v1469, 1
        %v1471 = vadd.f32 %v1469, %v1470
        %v1472 = vadd.f32 %v1400, %v1401
        %v1473 = vrot.slane %v1472, 4
        %v1474 = vadd.f32 %v1472, %v1473
        %v1475 = vrot.slane %v1474, 2
        %v1476 = vadd.f32 %v1474, %v1475
        %v1477 = vrot.slane %v1476, 1
        %v1478 = vadd.f32 %v1476, %v1477
        %v1479 = vadd.f32 %v1402, %v1403
        %v1480 = vrot.slane %v1479, 4
        %v1481 = vadd.f32 %v1479, %v1480
        %v1482 = vrot.slane %v1481, 2
        %v1483 = vadd.f32 %v1481, %v1482
        %v1484 = vrot.slane %v1483, 1
        %v1485 = vadd.f32 %v1483, %v1484
        %v1486 = vadd.f32 %v1404, %v1405
        %v1487 = vrot.slane %v1486, 4
        %v1488 = vadd.f32 %v1486, %v1487
        %v1489 = vrot.slane %v1488, 2
        %v1490 = vadd.f32 %v1488, %v1489
        %v1491 = vrot.slane %v1490, 1
        %v1492 = vadd.f32 %v1490, %v1491
        %v1493 = vadd.f32 %v1406, %v1407
        %v1494 = vrot.slane %v1493, 4
        %v1495 = vadd.f32 %v1493, %v1494
        %v1496 = vrot.slane %v1495, 2
        %v1497 = vadd.f32 %v1495, %v1496
        %v1498 = vrot.slane %v1497, 1
        %v1499 = vadd.f32 %v1497, %v1498
        %v1500 = vadd.f32 %v1408, %v1409
        %v1501 = vrot.slane %v1500, 4
        %v1502 = vadd.f32 %v1500, %v1501
        %v1503 = vrot.slane %v1502, 2
        %v1504 = vadd.f32 %v1502, %v1503
        %v1505 = vrot.slane %v1504, 1
        %v1506 = vadd.f32 %v1504, %v1505
        %v1507 = vadd.f32 %v1410, %v1411
        %v1508 = vrot.slane %v1507, 4
        %v1509 = vadd.f32 %v1507, %v1508
        %v1510 = vrot.slane %v1509, 2
        %v1511 = vadd.f32 %v1509, %v1510
        %v1512 = vrot.slane %v1511, 1
        %v1513 = vadd.f32 %v1511, %v1512
        %v1514 = vadd.f32 %v1412, %v1413
        %v1515 = vrot.slane %v1514, 4
        %v1516 = vadd.f32 %v1514, %v1515
        %v1517 = vrot.slane %v1516, 2
        %v1518 = vadd.f32 %v1516, %v1517
        %v1519 = vrot.slane %v1518, 1
        %v1520 = vadd.f32 %v1518, %v1519
        %v1521 = vadd.f32 %v1414, %v1415
        %v1522 = vrot.slane %v1521, 4
        %v1523 = vadd.f32 %v1521, %v1522
        %v1524 = vrot.slane %v1523, 2
        %v1525 = vadd.f32 %v1523, %v1524
        %v1526 = vrot.slane %v1525, 1
        %v1527 = vadd.f32 %v1525, %v1526
        %v1530 = vrot.slane %v1350, 1
        %v1531 = vrot.slane %v1350, 2
        %v1532 = vrot.slane %v1350, 3
        %v1533 = vrot.slane %v1350, 4
        %v1534 = vrot.slane %v1350, 5
        %v1535 = vrot.slane %v1350, 6
        %v1536 = vrot.slane %v1350, 7
        %v1537 = vrot.slane %v1351, 1
        %v1538 = vrot.slane %v1351, 2
        %v1539 = vrot.slane %v1351, 3
        %v1540 = vrot.slane %v1351, 4
        %v1541 = vrot.slane %v1351, 5
        %v1542 = vrot.slane %v1351, 6
        %v1543 = vrot.slane %v1351, 7
        %v1560 = vmul.f32 %v1422, %v1350
        %v1561 = vmul.f32 %v1429, %v1530
        %v1562 = vmul.f32 %v1436, %v1531
        %v1563 = vmul.f32 %v1443, %v1532
        %v1564 = vmul.f32 %v1450, %v1533
        %v1565 = vmul.f32 %v1457, %v1534
        %v1566 = vmul.f32 %v1464, %v1535
        %v1567 = vmul.f32 %v1471, %v1536
        %v1568 = vmul.f32 %v1478, %v1351
        %v1569 = vmul.f32 %v1485, %v1537
        %v1570 = vmul.f32 %v1492, %v1538
        %v1571 = vmul.f32 %v1499, %v1539
        %v1572 = vmul.f32 %v1506, %v1540
        %v1573 = vmul.f32 %v1513, %v1541
        %v1574 = vmul.f32 %v1520, %v1542
        %v1575 = vmul.f32 %v1527, %v1543
        %v1592 = vrot.slane %v1561, 7
        %v1593 = vsel %vm848, %v1592, %v1560
        %v1594 = vrot.slane %v1562, 6
        %v1595 = vsel %vm850, %v1594, %v1593
        %v1596 = vrot.slane %v1563, 5
        %v1597 = vsel %vm852, %v1596, %v1595
        %v1598 = vrot.slane %v1564, 4
        %v1599 = vsel %vm854, %v1598, %v1597
        %v1600 = vrot.slane %v1565, 3
        %v1601 = vsel %vm856, %v1600, %v1599
        %v1602 = vrot.slane %v1566, 2
        %v1603 = vsel %vm858, %v1602, %v1601
        %v1604 = vrot.slane %v1567, 1
        %v1605 = vsel %vm860, %v1604, %v1603
        %v1606 = vrot.slane %v1569, 7
        %v1607 = vsel %vm848, %v1606, %v1568
        %v1608 = vrot.slane %v1570, 6
        %v1609 = vsel %vm850, %v1608, %v1607
        %v1610 = vrot.slane %v1571, 5
        %v1611 = vsel %vm852, %v1610, %v1609
        %v1612 = vrot.slane %v1572, 4
        %v1613 = vsel %vm854, %v1612, %v1611
        %v1614 = vrot.slane %v1573, 3
        %v1615 = vsel %vm856, %v1614, %v1613
        %v1616 = vrot.slane %v1574, 2
        %v1617 = vsel %vm858, %v1616, %v1615
        %v1618 = vrot.slane %v1575, 1
        %v1619 = vsel %vm860, %v1618, %v1617
        %1622 = vst [vmem:[%s216] sm:$0xff] %v1605
        %1623 = vst [vmem:[%s216 + $0x8] sm:$0xff] %v1619
        %s1624 = sand.u32 %s118, 1
        %s1625 = scalar_lea.sflag [#allocation4], %s1624
        %s1626 = sand.u32 %s118, 1
        %s1627 = smul.addr %s1626, 16
        %s1628 = scalar_lea.vmem [#allocation5], %s1627
        // Predicated region
        $region41: #{tpu_custom_call.1} parent=35 // pred_check
          %p1629 = pneg %p128
        $region42: #{tpu_custom_call.1} parent=35 // pred_check_branch
          %1631 = sbr.rel (%p1629) target = $region44
        $region43: #{tpu_custom_call.1} parent=35 // pred_region
          %s1632 = smul.u32 2, %s21
          %s1634 = ssub.s32 256, 256
          %1635 = vsyncadd %s1625, %s1634
          %s1636 = smul.addr %s1632, 128
          %s1637 = scalar_lea.hbm %s4, %s1636
          %s1638 = sshll.u32 %s1628, 4
          %s1639 = int_to_ptr.vmem [resolvable:$true] %s1638
          %1644 = dma.vmem_to_hbm [thread:$0]  %s1639, 256, %s1637, %s1625, 128, 128, 8
        $region44: #{tpu_custom_call.1} parent=35 // pred_fallthru
          _
      $region36: #{tpu_custom_call.1} parent=5 // pred_fallthru
        _
      %p1645 = scmp.le.s32.totalorder 2, %s16
      // Predicated region
      $region45: #{tpu_custom_call.1} parent=5 // pred_check
        %p1646 = pneg %p1645
      $region46: #{tpu_custom_call.1} parent=5 // pred_check_branch
        %1648 = sbr.rel (%p1646) target = $region48
      $region47: #{tpu_custom_call.1} parent=5 // pred_region
        %s1649 = ssub.s32 %s16, 2
        // Predicated region
        $region49: #{tpu_custom_call.1} parent=47 // pred_check
          %p1650 = pneg %p134
        $region50: #{tpu_custom_call.1} parent=47 // pred_check_branch
          %1652 = sbr.rel (%p1650) target = $region52
        $region51: #{tpu_custom_call.1} parent=47 // pred_region
          %s1653 = sand.u32 %s119, 1
          %s1654 = scalar_lea.sflag [#allocation4], %s1653
          %s1655 = sand.u32 %s119, 1
          %s1656 = smul.addr %s1655, 16
          %s1657 = scalar_lea.vmem [#allocation5], %s1656
          %1658 = dma.done %s1654, 256
        $region52: #{tpu_custom_call.1} parent=47 // pred_fallthru
          _
      $region48: #{tpu_custom_call.1} parent=5 // pred_fallthru
        _
    $region6: #{tpu_custom_call.1} parent=1 // loop_footer
      %s20 = sadd.s32 1, %s16
    $region7: #{tpu_custom_call.1} parent=1 // loop_footer_branch
      %15 = sbr.rel target = $region3
    $region8: #{tpu_custom_call.1} parent=1 // loop_exit
      _
    %1659 = vsyncpa [#allocation3], 1
    %s1660 = scalar_lea.sflag [#allocation3], 1
    %1661 = vsyncpa %s1660, 1
    %1662 = vsyncpa [#allocation4], 1
    %s1663 = scalar_lea.sflag [#allocation4], 1
    %1664 = vsyncpa %s1663, 1

</llo_original>
